<compile_context>
chip_gen: v6e
topology: v6e:2x2x1
jax: 0.10.0
libtpu: 0.0.40
codegen_flags: <defaults>
</compile_context>

<pallas_src>
import jax
import jax.numpy as jnp
from jax.experimental import pallas as pl
from jax.experimental.pallas import tpu as pltpu


def _round_up(x, m):
    return (x + m - 1) // m * m


def _choose_batch_tile(batch, block_b):
    """Batch tile: big (256-row granule) but aiming for >= 2 grid tiles so both
    v7x TensorCores get work; a single full-batch tile for small batches."""
    tb = min(block_b, _round_up(pl.cdiv(batch, 2), 256))
    if tb >= batch:
        return batch                       # one tile == full dim (always layout-legal)
    tb = _round_up(tb, 8)                  # sublane (8) constraint for tiled batch dim
    return batch if tb >= batch else tb


def _critic_kernel(obs_ref, act_ref,
                   w1o_ref, w1a_ref, b1_ref,
                   w2_ref, b2_ref, w3_ref, b3_ref,
                   q_ref):
    cdt = w1o_ref.dtype                    # compute dtype of the MXU operands
    obs = obs_ref[...].astype(cdt)         # in-kernel cast (no extra HBM pass)
    act = act_ref[...].astype(cdt)

    # layer 1: cat(obs, act) @ W1.T + b1  ==  obs @ W1o + act @ W1a + b1   (both heads)
    h = (jnp.dot(obs, w1o_ref[...], preferred_element_type=jnp.float32)
         + jnp.dot(act, w1a_ref[...], preferred_element_type=jnp.float32)
         + b1_ref[...])
    h = jnp.maximum(h, 0.0).astype(cdt)    # ReLU/bias in f32, cast only at dot operand

    # layer 2: block-diagonal fused W2 (2H, 2H)
    h = jnp.dot(h, w2_ref[...], preferred_element_type=jnp.float32) + b2_ref[...]
    h = jnp.maximum(h, 0.0).astype(cdt)

    # layer 3: stacked W3 (2H, 2) -> (tb, 2); col 0 = q1, col 1 = q2
    q = jnp.dot(h, w3_ref[...], preferred_element_type=jnp.float32) + b3_ref[...]
    q_ref[...] = q.astype(q_ref.dtype)


def prepare_critic_params(params, feature_dim, compute_dtype=jnp.float32):
    """One-time weight prep (outside the hot path): fuse both Q heads.

    PyTorch Linear stores W as (out, in) and computes y = x @ W.T + b.
    """
    p1, p2 = params["q1"], params["q2"]
    H = p1["w2"].shape[0]
    F = feature_dim

    # W1: (H, F+A) -> (F+A, H); concat both heads on the output dim -> (F+A, 2H)
    w1 = jnp.concatenate([p1["w1"].T, p2["w1"].T], axis=1)
    w1o = w1[:F].astype(compute_dtype)                       # (F, 2H)
    w1a = w1[F:].astype(compute_dtype)                       # (A, 2H)
    b1 = jnp.concatenate([p1["b1"], p2["b1"]]).reshape(1, 2 * H).astype(jnp.float32)

    # W2: block-diagonal (2H, 2H)
    w2 = jnp.zeros((2 * H, 2 * H), jnp.float32)
    w2 = w2.at[:H, :H].set(p1["w2"].T).at[H:, H:].set(p2["w2"].T)
    w2 = w2.astype(compute_dtype)
    b2 = jnp.concatenate([p1["b2"], p2["b2"]]).reshape(1, 2 * H).astype(jnp.float32)

    # W3: stacked (2H, 2); column 0 = head 1, column 1 = head 2
    w3 = jnp.zeros((2 * H, 2), jnp.float32)
    w3 = w3.at[:H, 0].set(p1["w3"][0]).at[H:, 1].set(p2["w3"][0])
    w3 = w3.astype(compute_dtype)
    b3 = jnp.concatenate([p1["b3"], p2["b3"]]).reshape(1, 2).astype(jnp.float32)

    return {"w1o": w1o, "w1a": w1a, "b1": b1, "w2": w2, "b2": b2, "w3": w3, "b3": b3}


def critic_pallas(obs, action, prepared, *, block_b=1024):
    """obs: (B, F) f32, action: (B, A) f32. Returns (q1, q2), each (B, 1) f32."""
    B, F = obs.shape
    A = action.shape[-1]
    w1o, w1a, b1, w2, b2, w3, b3 = (prepared[k] for k in
                                    ("w1o", "w1a", "b1", "w2", "b2", "w3", "b3"))
    H2 = w2.shape[0]
    assert w1o.shape == (F, H2) and w1a.shape == (A, H2)

    tb = _choose_batch_tile(B, block_b)
    n_tiles = pl.cdiv(B, tb)

    def full(shape):  # weights/biases: full-array block, constant index_map
        return pl.BlockSpec(shape, lambda i: (0, 0))

    grid_spec = pltpu.PrefetchScalarGridSpec(
        num_scalar_prefetch=0,
        grid=(n_tiles,),
        in_specs=[pl.BlockSpec((tb, F), lambda i: (i, 0)),
                  pl.BlockSpec((tb, A), lambda i: (i, 0)),
                  full((F, H2)), full((A, H2)), full((1, H2)),
                  full((H2, H2)), full((1, H2)),
                  full((H2, 2)), full((1, 2))],
        out_specs=pl.BlockSpec((tb, 2), lambda i: (i, 0)),
    )

    q = pl.pallas_call(
        _critic_kernel,
        out_shape=jax.ShapeDtypeStruct((B, 2), jnp.float32),
        grid_spec=grid_spec,
        compiler_params=pltpu.CompilerParams(
            dimension_semantics=("parallel",)),
    )(obs, action, w1o, w1a, b1, w2, b2, w3, b3)

    return q[:, 0:1], q[:, 1:2]


def critic_ref(obs, action, params):
    """Pure-JAX reference mirroring the PyTorch forward."""
    h = jnp.concatenate([obs, action], axis=-1)

    def mlp(p):
        x = jnp.maximum(h @ p["w1"].T + p["b1"], 0.0)
        x = jnp.maximum(x @ p["w2"].T + p["b2"], 0.0)
        return x @ p["w3"].T + p["b3"]

    return mlp(params["q1"]), mlp(params["q2"])


def init_params(key, feature_dim, action_dim, hidden_dim):
    # TODO(synk): utils.weight_init (orthogonal) is init-time only; using a
    # deterministic scaled-normal stand-in — forward semantics are unaffected.
    D = feature_dim + action_dim

    def head(k):
        k1, k2, k3, k4 = jax.random.split(k, 4)
        return {
            "w1": 0.1 * jax.random.normal(k1, (hidden_dim, D), jnp.float32),
            "b1": 0.1 * jax.random.normal(k4, (hidden_dim,), jnp.float32),
            "w2": 0.1 * jax.random.normal(k2, (hidden_dim, hidden_dim), jnp.float32),
            "b2": jnp.zeros((hidden_dim,), jnp.float32),
            "w3": 0.1 * jax.random.normal(k3, (1, hidden_dim), jnp.float32),
            "b3": jnp.zeros((1,), jnp.float32),
        }

    ka, kb = jax.random.split(key)
    return {"q1": head(ka), "q2": head(kb)}


if __name__ == "__main__":
    feature_dim, action_dim, hidden_dim = 50, 6, 32
    key = jax.random.PRNGKey(0)
    kp, ko, ka, ko2, ka2 = jax.random.split(key, 5)
    params = init_params(kp, feature_dim, action_dim, hidden_dim)

    # Weight prep is hoisted out of the hot path (done once).
    prep_f32 = prepare_critic_params(params, feature_dim)

    # --- small batch (single full-batch tile) ---
    B = 8
    obs = jax.random.normal(ko, (B, feature_dim), jnp.float32)
    action = jax.random.normal(ka, (B, action_dim), jnp.float32)

    critic = jax.jit(lambda o, a: critic_pallas(o, a, prep_f32))
    q1, q2 = jax.block_until_ready(critic(obs, action))
    r1, r2 = critic_ref(obs, action, params)
    assert q1.shape == (B, 1) and q2.shape == (B, 1)
    err = max(float(jnp.max(jnp.abs(q1 - r1))), float(jnp.max(jnp.abs(q2 - r2))))
    assert err < 1e-4, err

    # --- multi-tile batch with a partial edge block (no wrapper-side padding) ---
    B2 = 260
    obs2 = jax.random.normal(ko2, (B2, feature_dim), jnp.float32)
    action2 = jax.random.normal(ka2, (B2, action_dim), jnp.float32)
    q1b, q2b = jax.block_until_ready(critic_pallas(obs2, action2, prep_f32))
    r1b, r2b = critic_ref(obs2, action2, params)
    assert q1b.shape == (B2, 1) and q2b.shape == (B2, 1)
    errb = max(float(jnp.max(jnp.abs(q1b - r1b))), float(jnp.max(jnp.abs(q2b - r2b))))
    assert errb < 1e-4, errb

    # --- bf16 MXU operands (f32 accumulation); inputs stay f32 in HBM ---
    prep_bf16 = prepare_critic_params(params, feature_dim, compute_dtype=jnp.bfloat16)
    q1c, q2c = jax.block_until_ready(critic_pallas(obs, action, prep_bf16))
    errc = max(float(jnp.max(jnp.abs(q1c - r1))), float(jnp.max(jnp.abs(q2c - r2))))
    assert errc < 5e-2, errc

    print("KERNEL_OK")
</pallas_src>

<mosaic_0001>
module attributes {stable_mosaic.version = 11 : i64} {
  func.func @_critic_kernel(%arg0: i32, %arg1: memref<8x50xf32, #tpu.memory_space<vmem>>, %arg2: memref<8x6xf32, #tpu.memory_space<vmem>>, %arg3: memref<50x64xf32, #tpu.memory_space<vmem>>, %arg4: memref<6x64xf32, #tpu.memory_space<vmem>>, %arg5: memref<1x64xf32, #tpu.memory_space<vmem>>, %arg6: memref<64x64xf32, #tpu.memory_space<vmem>>, %arg7: memref<1x64xf32, #tpu.memory_space<vmem>>, %arg8: memref<64x2xf32, #tpu.memory_space<vmem>>, %arg9: memref<1x2xf32, #tpu.memory_space<vmem>>, %arg10: memref<8x2xf32, #tpu.memory_space<vmem>>) attributes {dimension_semantics = [#tpu.dimension_semantics<parallel>], iteration_bounds = array<i64: 1>, scalar_prefetch = 0 : i64, scratch_operands = 0 : i64, tpu.core_type = #tpu.core_type<tc>, window_params = [{transform_indices = @transform_0, window_bounds = array<i64: 8, 50>}, {transform_indices = @transform_1, window_bounds = array<i64: 8, 6>}, {pipeline_mode = #tpu.pipeline_mode<synchronous>, transform_indices = @transform_2, window_bounds = array<i64: 50, 64>}, {pipeline_mode = #tpu.pipeline_mode<synchronous>, transform_indices = @transform_3, window_bounds = array<i64: 6, 64>}, {pipeline_mode = #tpu.pipeline_mode<synchronous>, transform_indices = @transform_4, window_bounds = array<i64: 1, 64>}, {pipeline_mode = #tpu.pipeline_mode<synchronous>, transform_indices = @transform_5, window_bounds = array<i64: 64, 64>}, {pipeline_mode = #tpu.pipeline_mode<synchronous>, transform_indices = @transform_6, window_bounds = array<i64: 1, 64>}, {pipeline_mode = #tpu.pipeline_mode<synchronous>, transform_indices = @transform_7, window_bounds = array<i64: 64, 2>}, {pipeline_mode = #tpu.pipeline_mode<synchronous>, transform_indices = @transform_8, window_bounds = array<i64: 1, 2>}, {transform_indices = @transform_9, window_bounds = array<i64: 8, 2>}]} {
    %c0 = arith.constant 0 : index
    %c0_0 = arith.constant 0 : index
    %0 = vector.load %arg1[%c0, %c0_0] : memref<8x50xf32, #tpu.memory_space<vmem>>, vector<8x50xf32>
    %c0_1 = arith.constant 0 : index
    %c0_2 = arith.constant 0 : index
    %1 = vector.load %arg2[%c0_1, %c0_2] : memref<8x6xf32, #tpu.memory_space<vmem>>, vector<8x6xf32>
    %c0_3 = arith.constant 0 : index
    %c0_4 = arith.constant 0 : index
    %2 = vector.load %arg3[%c0_3, %c0_4] : memref<50x64xf32, #tpu.memory_space<vmem>>, vector<50x64xf32>
    %cst = arith.constant dense<0.000000e+00> : vector<8x64xf32>
    %3 = tpu.matmul %0, %2, %cst {dimension_numbers = #tpu.dot_dimension_numbers<[1], [0], [0], [1], [0, 0, 1, 1], [], []>} : vector<8x50xf32>, vector<50x64xf32>, vector<8x64xf32> -> vector<8x64xf32>
    %c0_5 = arith.constant 0 : index
    %c0_6 = arith.constant 0 : index
    %4 = vector.load %arg4[%c0_5, %c0_6] : memref<6x64xf32, #tpu.memory_space<vmem>>, vector<6x64xf32>
    %cst_7 = arith.constant dense<0.000000e+00> : vector<8x64xf32>
    %5 = tpu.matmul %1, %4, %cst_7 {dimension_numbers = #tpu.dot_dimension_numbers<[1], [0], [0], [1], [0, 0, 1, 1], [], []>} : vector<8x6xf32>, vector<6x64xf32>, vector<8x64xf32> -> vector<8x64xf32>
    %6 = arith.addf %3, %5 : vector<8x64xf32>
    %c0_8 = arith.constant 0 : index
    %c0_9 = arith.constant 0 : index
    %7 = vector.load %arg5[%c0_8, %c0_9] : memref<1x64xf32, #tpu.memory_space<vmem>>, vector<1x64xf32>
    %8 = vector.broadcast %7 : vector<1x64xf32> to vector<8x64xf32>
    %9 = arith.addf %6, %8 : vector<8x64xf32>
    %cst_10 = arith.constant 0.000000e+00 : f32
    %10 = vector.broadcast %cst_10 : f32 to vector<8x64xf32>
    %11 = arith.maximumf %9, %10 : vector<8x64xf32>
    %c0_11 = arith.constant 0 : index
    %c0_12 = arith.constant 0 : index
    %12 = vector.load %arg6[%c0_11, %c0_12] : memref<64x64xf32, #tpu.memory_space<vmem>>, vector<64x64xf32>
    %cst_13 = arith.constant dense<0.000000e+00> : vector<8x64xf32>
    %13 = tpu.matmul %11, %12, %cst_13 {dimension_numbers = #tpu.dot_dimension_numbers<[1], [0], [0], [1], [0, 0, 1, 1], [], []>} : vector<8x64xf32>, vector<64x64xf32>, vector<8x64xf32> -> vector<8x64xf32>
    %c0_14 = arith.constant 0 : index
    %c0_15 = arith.constant 0 : index
    %14 = vector.load %arg7[%c0_14, %c0_15] : memref<1x64xf32, #tpu.memory_space<vmem>>, vector<1x64xf32>
    %15 = vector.broadcast %14 : vector<1x64xf32> to vector<8x64xf32>
    %16 = arith.addf %13, %15 : vector<8x64xf32>
    %cst_16 = arith.constant 0.000000e+00 : f32
    %17 = vector.broadcast %cst_16 : f32 to vector<8x64xf32>
    %18 = arith.maximumf %16, %17 : vector<8x64xf32>
    %c0_17 = arith.constant 0 : index
    %c0_18 = arith.constant 0 : index
    %19 = vector.load %arg8[%c0_17, %c0_18] : memref<64x2xf32, #tpu.memory_space<vmem>>, vector<64x2xf32>
    %cst_19 = arith.constant dense<0.000000e+00> : vector<8x2xf32>
    %20 = tpu.matmul %18, %19, %cst_19 {dimension_numbers = #tpu.dot_dimension_numbers<[1], [0], [0], [1], [0, 0, 1, 1], [], []>} : vector<8x64xf32>, vector<64x2xf32>, vector<8x2xf32> -> vector<8x2xf32>
    %c0_20 = arith.constant 0 : index
    %c0_21 = arith.constant 0 : index
    %21 = vector.load %arg9[%c0_20, %c0_21] : memref<1x2xf32, #tpu.memory_space<vmem>>, vector<1x2xf32>
    %22 = vector.broadcast %21 : vector<1x2xf32> to vector<8x2xf32>
    %23 = arith.addf %20, %22 : vector<8x2xf32>
    %c0_22 = arith.constant 0 : index
    %c0_23 = arith.constant 0 : index
    %24 = vector.load %arg10[%c0_22, %c0_23] : memref<8x2xf32, #tpu.memory_space<vmem>>, vector<8x2xf32>
    tpu.vector_store %arg10[%c0_22, %c0_23], %23 {strides = array<i32>} : memref<8x2xf32, #tpu.memory_space<vmem>>, vector<8x2xf32>,
    return
  }
  func.func @transform_0(%arg0: i32) -> (i32, i32) {
    %c0_i32 = arith.constant 0 : i32
    %c0_i32_0 = arith.constant 0 : i32
    return %arg0, %c0_i32 : i32, i32
  }
  func.func @transform_1(%arg0: i32) -> (i32, i32) {
    %c0_i32 = arith.constant 0 : i32
    %c0_i32_0 = arith.constant 0 : i32
    return %arg0, %c0_i32 : i32, i32
  }
  func.func @transform_2(%arg0: i32) -> (i32, i32) {
    %c0_i32 = arith.constant 0 : i32
    %c0_i32_0 = arith.constant 0 : i32
    %c0_i32_1 = arith.constant 0 : i32
    return %c0_i32, %c0_i32_0 : i32, i32
  }
  func.func @transform_3(%arg0: i32) -> (i32, i32) {
    %c0_i32 = arith.constant 0 : i32
    %c0_i32_0 = arith.constant 0 : i32
    %c0_i32_1 = arith.constant 0 : i32
    return %c0_i32, %c0_i32_0 : i32, i32
  }
  func.func @transform_4(%arg0: i32) -> (i32, i32) {
    %c0_i32 = arith.constant 0 : i32
    %c0_i32_0 = arith.constant 0 : i32
    %c0_i32_1 = arith.constant 0 : i32
    return %c0_i32, %c0_i32_0 : i32, i32
  }
  func.func @transform_5(%arg0: i32) -> (i32, i32) {
    %c0_i32 = arith.constant 0 : i32
    %c0_i32_0 = arith.constant 0 : i32
    %c0_i32_1 = arith.constant 0 : i32
    return %c0_i32, %c0_i32_0 : i32, i32
  }
  func.func @transform_6(%arg0: i32) -> (i32, i32) {
    %c0_i32 = arith.constant 0 : i32
    %c0_i32_0 = arith.constant 0 : i32
    %c0_i32_1 = arith.constant 0 : i32
    return %c0_i32, %c0_i32_0 : i32, i32
  }
  func.func @transform_7(%arg0: i32) -> (i32, i32) {
    %c0_i32 = arith.constant 0 : i32
    %c0_i32_0 = arith.constant 0 : i32
    %c0_i32_1 = arith.constant 0 : i32
    return %c0_i32, %c0_i32_0 : i32, i32
  }
  func.func @transform_8(%arg0: i32) -> (i32, i32) {
    %c0_i32 = arith.constant 0 : i32
    %c0_i32_0 = arith.constant 0 : i32
    %c0_i32_1 = arith.constant 0 : i32
    return %c0_i32, %c0_i32_0 : i32, i32
  }
  func.func @transform_9(%arg0: i32) -> (i32, i32) {
    %c0_i32 = arith.constant 0 : i32
    %c0_i32_0 = arith.constant 0 : i32
    return %arg0, %c0_i32 : i32, i32
  }
}

</mosaic_0001>

<llo_original>
// kernel: _lambda_.1
$region0: #{_lambda_.1}
  #allocation0 [shape = 'u32[]', space=smem, size = 0x4, offset = 0x4, fixed_abs, tag = 'smem constant byte address 0x4 - core index']
  #allocation1 [shape = 'u32[144,128]{1,0:T(1,128)}', space=vmem, size = 0x12000, scoped, tag = 'internal scratch']
  %s0 = inlined_call_operand.hbm [shape: f32[8,50], index: 0, kind: input, shape index: {}]
  %s1 = inlined_call_operand.hbm [shape: f32[8,6], index: 1, kind: input, shape index: {}]
  %s2 = inlined_call_operand.hbm [shape: f32[50,64], index: 2, kind: input, shape index: {}]
  %s3 = inlined_call_operand.vmem [shape: f32[6,64], index: 3, kind: input, shape index: {}]
  %s4 = inlined_call_operand.vmem [shape: f32[1,64], index: 4, kind: input, shape index: {}]
  %s5 = inlined_call_operand.hbm [shape: f32[64,64], index: 5, kind: input, shape index: {}]
  %s6 = inlined_call_operand.vmem [shape: f32[1,64], index: 6, kind: input, shape index: {}]
  %s7 = inlined_call_operand.hbm [shape: f32[64,2], index: 7, kind: input, shape index: {}]
  %s8 = inlined_call_operand.vmem [shape: f32[1,2], index: 8, kind: input, shape index: {}]
  %s9 = inlined_call_operand.vmem [shape: f32[8,2], index: 9, kind: output, shape index: {}]
  %s10 = sld [smem:[#allocation0]]
  $region66: #{_lambda_.1} parent=0
    _
  %s12 = ssub.s32 1, %s10
  %s13 = scalar_select 0, %s12, %s10
  $region1: #{_lambda_.1} parent=0
    #allocation2 [shape = 'u8[4096]{0}', space=vmem, size = 0x1000, scoped, tag = 'input window, operand 0, single buffered']
    #allocation3 [shape = 's32[1]{0}', space=sflag, size = 0x4, scoped, tag = 'scoped memory for _lambda_.1']
    #allocation4 [shape = 'u8[4096]{0}', space=vmem, size = 0x1000, scoped, tag = 'input window, operand 1, single buffered']
    #allocation5 [shape = 's32[1]{0}', space=sflag, size = 0x4, scoped, tag = 'scoped memory for _lambda_.1']
    #allocation6 [shape = 'u8[28672]{0}', space=vmem, size = 0x7000, scoped, tag = 'input window, operand 2, single buffered']
    #allocation7 [shape = 'u8[32768]{0}', space=vmem, size = 0x8000, scoped, tag = 'input window, operand 5, single buffered']
    #allocation8 [shape = 's32[1]{0}', space=sflag, size = 0x4, scoped, tag = 'scoped memory for _lambda_.1']
    #allocation9 [shape = 'u8[32768]{0}', space=vmem, size = 0x8000, scoped, tag = 'input window, operand 7, single buffered']
    %14 = vsyncpa [#allocation3], 0
    %15 = vsyncpa [#allocation5], 0
    %16 = vsyncpa [#allocation8], 0
    // Predicated region
    $region2: #{_lambda_.1} parent=1 // pred_check
      _
    $region3: #{_lambda_.1} parent=1 // pred_check_branch
      %18 = sbr.rel (0) target = $region5
    $region4: #{_lambda_.1} parent=1 // pred_region
      %s20 = ssub.s32 128, 128
      %21 = vsyncadd [#allocation3], %s20
      %s23 = sshll.u32 [#allocation2], 4
      %s24 = int_to_ptr.vmem [resolvable:$true] %s23
      %26 = dma.hbm_to_vmem [thread:$0]  %s0, 128, %s24, [#allocation3]
    $region5: #{_lambda_.1} parent=1 // pred_fallthru
      _
    // Predicated region
    $region6: #{_lambda_.1} parent=1 // pred_check
      _
    $region7: #{_lambda_.1} parent=1 // pred_check_branch
      %28 = sbr.rel (0) target = $region9
    $region8: #{_lambda_.1} parent=1 // pred_region
      %s30 = ssub.s32 128, 128
      %31 = vsyncadd [#allocation5], %s30
      %s33 = sshll.u32 [#allocation4], 4
      %s34 = int_to_ptr.vmem [resolvable:$true] %s33
      %36 = dma.hbm_to_vmem [thread:$0]  %s1, 128, %s34, [#allocation5]
    $region9: #{_lambda_.1} parent=1 // pred_fallthru
      _
    // Predicated region
    $region10: #{_lambda_.1} parent=1 // pred_check
      _
    $region11: #{_lambda_.1} parent=1 // pred_check_branch
      %38 = sbr.rel (0) target = $region13
    $region12: #{_lambda_.1} parent=1 // pred_region
      %s40 = ssub.s32 896, 896
      %41 = vsyncadd [#allocation5], %s40
      %s42 = sshll.u32 [#allocation6], 4
      %s43 = int_to_ptr.vmem [resolvable:$true] %s42
      %48 = dma.hbm_to_vmem [thread:$0]  %s2, 896, %s43, [#allocation5], 128, 128, 8
    $region13: #{_lambda_.1} parent=1 // pred_fallthru
      _
    // Predicated region
    $region14: #{_lambda_.1} parent=1 // pred_check
      _
    $region15: #{_lambda_.1} parent=1 // pred_check_branch
      %50 = sbr.rel (0) target = $region17
    $region16: #{_lambda_.1} parent=1 // pred_region
      _
    $region17: #{_lambda_.1} parent=1 // pred_fallthru
      _
    // Predicated region
    $region18: #{_lambda_.1} parent=1 // pred_check
      _
    $region19: #{_lambda_.1} parent=1 // pred_check_branch
      %52 = sbr.rel (0) target = $region21
    $region20: #{_lambda_.1} parent=1 // pred_region
      _
    $region21: #{_lambda_.1} parent=1 // pred_fallthru
      _
    // Predicated region
    $region22: #{_lambda_.1} parent=1 // pred_check
      _
    $region23: #{_lambda_.1} parent=1 // pred_check_branch
      %54 = sbr.rel (0) target = $region25
    $region24: #{_lambda_.1} parent=1 // pred_region
      %s56 = ssub.s32 1024, 1024
      %57 = vsyncadd [#allocation8], %s56
      %s58 = sshll.u32 [#allocation7], 4
      %s59 = int_to_ptr.vmem [resolvable:$true] %s58
      %64 = dma.hbm_to_vmem [thread:$0]  %s5, 1024, %s59, [#allocation8], 128, 128, 8
    $region25: #{_lambda_.1} parent=1 // pred_fallthru
      _
    // Predicated region
    $region26: #{_lambda_.1} parent=1 // pred_check
      _
    $region27: #{_lambda_.1} parent=1 // pred_check_branch
      %66 = sbr.rel (0) target = $region29
    $region28: #{_lambda_.1} parent=1 // pred_region
      _
    $region29: #{_lambda_.1} parent=1 // pred_fallthru
      _
    // Predicated region
    $region30: #{_lambda_.1} parent=1 // pred_check
      _
    $region31: #{_lambda_.1} parent=1 // pred_check_branch
      %68 = sbr.rel (0) target = $region33
    $region32: #{_lambda_.1} parent=1 // pred_region
      %s70 = ssub.s32 1024, 1024
      %71 = vsyncadd [#allocation8], %s70
      %s72 = sshll.u32 [#allocation9], 4
      %s73 = int_to_ptr.vmem [resolvable:$true] %s72
      %78 = dma.hbm_to_vmem [thread:$0]  %s7, 1024, %s73, [#allocation8], 128, 128, 8
    $region33: #{_lambda_.1} parent=1 // pred_fallthru
      _
    // Predicated region
    $region34: #{_lambda_.1} parent=1 // pred_check
      _
    $region35: #{_lambda_.1} parent=1 // pred_check_branch
      %80 = sbr.rel (0) target = $region37
    $region36: #{_lambda_.1} parent=1 // pred_region
      _
    $region37: #{_lambda_.1} parent=1 // pred_fallthru
      _
    // Predicated region
    $region38: #{_lambda_.1} parent=1 // pred_check
      _
    $region39: #{_lambda_.1} parent=1 // pred_check_branch
      %82 = sbr.rel (0) target = $region41
    $region40: #{_lambda_.1} parent=1 // pred_region
      %83 = dma.done [#allocation3], 128
    $region41: #{_lambda_.1} parent=1 // pred_fallthru
      _
    // Predicated region
    $region42: #{_lambda_.1} parent=1 // pred_check
      _
    $region43: #{_lambda_.1} parent=1 // pred_check_branch
      %85 = sbr.rel (0) target = $region45
    $region44: #{_lambda_.1} parent=1 // pred_region
      %86 = dma.done [#allocation5], 128
    $region45: #{_lambda_.1} parent=1 // pred_fallthru
      _
    // Predicated region
    $region46: #{_lambda_.1} parent=1 // pred_check
      _
    $region47: #{_lambda_.1} parent=1 // pred_check_branch
      %88 = sbr.rel (0) target = $region49
    $region48: #{_lambda_.1} parent=1 // pred_region
      %89 = dma.done [#allocation5], 896
    $region49: #{_lambda_.1} parent=1 // pred_fallthru
      _
    // Predicated region
    $region50: #{_lambda_.1} parent=1 // pred_check
      _
    $region51: #{_lambda_.1} parent=1 // pred_check_branch
      %91 = sbr.rel (0) target = $region53
    $region52: #{_lambda_.1} parent=1 // pred_region
      %92 = dma.done [#allocation8], 1024
    $region53: #{_lambda_.1} parent=1 // pred_fallthru
      _
    // Predicated region
    $region54: #{_lambda_.1} parent=1 // pred_check
      _
    $region55: #{_lambda_.1} parent=1 // pred_check_branch
      %94 = sbr.rel (0) target = $region57
    $region56: #{_lambda_.1} parent=1 // pred_region
      %95 = dma.done [#allocation8], 1024
    $region57: #{_lambda_.1} parent=1 // pred_fallthru
      _
    %v96 = vld [vmem:[#allocation2] sm:$0xff]
    %v97 = vld [vmem:[#allocation4] sm:$0xff]
    %v98 = vld [vmem:[#allocation6] sm:$0xff]
    %v99 = vld [vmem:[#allocation6 + $0x8] sm:$0xff]
    %v100 = vld [vmem:[#allocation6 + $0x10] sm:$0xff]
    %v101 = vld [vmem:[#allocation6 + $0x18] sm:$0xff]
    %v102 = vld [vmem:[#allocation6 + $0x20] sm:$0xff]
    %v103 = vld [vmem:[#allocation6 + $0x28] sm:$0xff]
    %v104 = vld [vmem:[#allocation6 + $0x30] sm:$0x3]
    %v105 = vld [vmem:[%s3] sm:$0x3f]
    %vm106 = vcmask 48128
    %v108 = vsel %vm106, %v97, 0
    %vm110 = vcmask 1045504
    %v112 = vsel %vm110, %v105, 0
    %114 = vmatprep.subr.mxu0 0.0
    %115 = vmatpush1.msra.mxu0 0.0
    %116 = vmatprep.subr.mxu0 0.0
    %117 = vmatpush1.msra.mxu0 0.0
    %118 = vmatprep.subr.mxu0 0.0
    %119 = vmatpush1.msra.mxu0 0.0
    %120 = vmatprep.subr.mxu0 0.0
    %121 = vmatpush1.msra.mxu0 0.0
    %122 = vmatprep.subr.mxu0 0.0
    %123 = vmatpush1.msra.mxu0 0.0
    %124 = vmatprep.subr.mxu0 0.0
    %125 = vmatpush1.msra.mxu0 0.0
    %126 = vmatprep.subr.mxu0 0.0
    %127 = vmatpush1.msra.mxu0 0.0
    %128 = vmatprep.subr.mxu0 0.0
    %129 = vmatpush1.msra.mxu0 0.0
    %130 = vmatprep.subr.mxu0 0.0
    %131 = vmatpush1.msra.mxu0 0.0
    %132 = vmatprep.subr.mxu0 0.0
    %133 = vmatpush1.msra.mxu0 0.0
    %134 = vmatprep.subr.mxu0 0.0
    %135 = vmatpush1.msra.mxu0 0.0
    %136 = vmatprep.subr.mxu0 0.0
    %137 = vmatpush1.msra.mxu0 0.0
    %138 = vmatprep.subr.mxu0 0.0
    %139 = vmatpush1.msra.mxu0 0.0
    %140 = vmatprep.subr.mxu0 0.0
    %141 = vmatpush1.msra.mxu0 0.0
    %142 = vmatprep.subr.mxu0 0.0
    %143 = vmatpush1.msra.mxu0 0.0
    %144 = vmatprep.subr.mxu0 0.0
    %145 = vmatpush1.msra.mxu0 %v112
    %146 = vmatprep.subr.mxu0 0.0
    %147 = vmatpush2.msra.mxu0 0.0
    %148 = vmatprep.subr.mxu0 0.0
    %149 = vmatpush2.msra.mxu0 0.0
    %150 = vmatprep.subr.mxu0 0.0
    %151 = vmatpush2.msra.mxu0 0.0
    %152 = vmatprep.subr.mxu0 0.0
    %153 = vmatpush2.msra.mxu0 0.0
    %154 = vmatprep.subr.mxu0 0.0
    %155 = vmatpush2.msra.mxu0 0.0
    %156 = vmatprep.subr.mxu0 0.0
    %157 = vmatpush2.msra.mxu0 0.0
    %158 = vmatprep.subr.mxu0 0.0
    %159 = vmatpush2.msra.mxu0 0.0
    %160 = vmatprep.subr.mxu0 0.0
    %161 = vmatpush2.msra.mxu0 0.0
    %162 = vmatprep.subr.mxu0 0.0
    %163 = vmatpush2.msra.mxu0 0.0
    %164 = vmatprep.subr.mxu0 0.0
    %165 = vmatpush2.msra.mxu0 0.0
    %166 = vmatprep.subr.mxu0 0.0
    %167 = vmatpush2.msra.mxu0 0.0
    %168 = vmatprep.subr.mxu0 0.0
    %169 = vmatpush2.msra.mxu0 0.0
    %170 = vmatprep.subr.mxu0 0.0
    %171 = vmatpush2.msra.mxu0 0.0
    %172 = vmatprep.subr.mxu0 0.0
    %173 = vmatpush2.msra.mxu0 0.0
    %174 = vmatprep.subr.mxu0 0.0
    %175 = vmatpush2.msra.mxu0 0.0
    %176 = vmatprep.subr.mxu0 0.0
    %177 = vmatpush2.msra.mxu0 0.0
    %178 = vmatprep.mubr.f32.mxu0 0.0
    %179 = vmatmul.mubr.f32.gmra.mxu0 %v108
    %v180 = vpop.f32.mrf.mxu0
    %v181 = vadd.f32 0.0, %v180
    %v182 = vpop.f32.mrf.mxu0
    %183 = vdwg.mxu0
    %vm184 = vcmask 408576
    %v186 = vsel %vm184, %v96, 0
    %vm188 = vcmask 1041408
    %v190 = vsel %vm188, %v104, 0
    %192 = vmatprep.subr.mxu0 0.0
    %193 = vmatpush1.msra.mxu0 0.0
    %194 = vmatprep.subr.mxu0 0.0
    %195 = vmatpush1.msra.mxu0 0.0
    %196 = vmatprep.subr.mxu0 0.0
    %197 = vmatpush1.msra.mxu0 0.0
    %198 = vmatprep.subr.mxu0 0.0
    %199 = vmatpush1.msra.mxu0 0.0
    %200 = vmatprep.subr.mxu0 0.0
    %201 = vmatpush1.msra.mxu0 0.0
    %202 = vmatprep.subr.mxu0 0.0
    %203 = vmatpush1.msra.mxu0 0.0
    %204 = vmatprep.subr.mxu0 0.0
    %205 = vmatpush1.msra.mxu0 0.0
    %206 = vmatprep.subr.mxu0 0.0
    %207 = vmatpush1.msra.mxu0 0.0
    %208 = vmatprep.subr.mxu0 0.0
    %209 = vmatpush1.msra.mxu0 0.0
    %210 = vmatprep.subr.mxu0 0.0
    %211 = vmatpush1.msra.mxu0 %v190
    %212 = vmatprep.subr.mxu0 0.0
    %213 = vmatpush1.msra.mxu0 %v103
    %214 = vmatprep.subr.mxu0 0.0
    %215 = vmatpush1.msra.mxu0 %v102
    %216 = vmatprep.subr.mxu0 0.0
    %217 = vmatpush1.msra.mxu0 %v101
    %218 = vmatprep.subr.mxu0 0.0
    %219 = vmatpush1.msra.mxu0 %v100
    %220 = vmatprep.subr.mxu0 0.0
    %221 = vmatpush1.msra.mxu0 %v99
    %222 = vmatprep.subr.mxu0 0.0
    %223 = vmatpush1.msra.mxu0 %v98
    %224 = vmatprep.subr.mxu0 0.0
    %225 = vmatpush2.msra.mxu0 0.0
    %226 = vmatprep.subr.mxu0 0.0
    %227 = vmatpush2.msra.mxu0 0.0
    %228 = vmatprep.subr.mxu0 0.0
    %229 = vmatpush2.msra.mxu0 0.0
    %230 = vmatprep.subr.mxu0 0.0
    %231 = vmatpush2.msra.mxu0 0.0
    %232 = vmatprep.subr.mxu0 0.0
    %233 = vmatpush2.msra.mxu0 0.0
    %234 = vmatprep.subr.mxu0 0.0
    %235 = vmatpush2.msra.mxu0 0.0
    %236 = vmatprep.subr.mxu0 0.0
    %237 = vmatpush2.msra.mxu0 0.0
    %238 = vmatprep.subr.mxu0 0.0
    %239 = vmatpush2.msra.mxu0 0.0
    %240 = vmatprep.subr.mxu0 0.0
    %241 = vmatpush2.msra.mxu0 0.0
    %242 = vmatprep.subr.mxu0 0.0
    %243 = vmatpush2.msra.mxu0 0.0
    %244 = vmatprep.subr.mxu0 0.0
    %245 = vmatpush2.msra.mxu0 0.0
    %246 = vmatprep.subr.mxu0 0.0
    %247 = vmatpush2.msra.mxu0 0.0
    %248 = vmatprep.subr.mxu0 0.0
    %249 = vmatpush2.msra.mxu0 0.0
    %250 = vmatprep.subr.mxu0 0.0
    %251 = vmatpush2.msra.mxu0 0.0
    %252 = vmatprep.subr.mxu0 0.0
    %253 = vmatpush2.msra.mxu0 0.0
    %254 = vmatprep.subr.mxu0 0.0
    %255 = vmatpush2.msra.mxu0 0.0
    %256 = vmatprep.mubr.f32.mxu0 0.0
    %257 = vmatmul.mubr.f32.gmra.mxu0 %v186
    %v258 = vpop.f32.mrf.mxu0
    %v259 = vadd.f32 %v181, %v258
    %v260 = vpop.f32.mrf.mxu0
    %261 = vdwg.mxu0
    %v262 = vld [vmem:[%s4] sm:$0x1]
    %v264 = vlaneseq
    %v265 = vshrl.u32 %v264, 7
    %v266 = vsub.s32 0, %v265
    %v267 = vrot.slane %v262, %v266
    %v269 = vadd.f32 %v259, %v267
    %v270 = vmax.f32 %v269, 0.0
    %v271 = vld [vmem:[#allocation7] sm:$0xff]
    %v272 = vld [vmem:[#allocation7 + $0x8] sm:$0xff]
    %v273 = vld [vmem:[#allocation7 + $0x10] sm:$0xff]
    %v274 = vld [vmem:[#allocation7 + $0x18] sm:$0xff]
    %v275 = vld [vmem:[#allocation7 + $0x20] sm:$0xff]
    %v276 = vld [vmem:[#allocation7 + $0x28] sm:$0xff]
    %v277 = vld [vmem:[#allocation7 + $0x30] sm:$0xff]
    %v278 = vld [vmem:[#allocation7 + $0x38] sm:$0xff]
    %v279 = vld [vmem:[%s6] sm:$0x1]
    %v281 = vlaneseq
    %v282 = vshrl.u32 %v281, 7
    %v283 = vsub.s32 0, %v282
    %v284 = vrot.slane %v279, %v283
    %vm286 = vcmask 523264
    %v288 = vsel %vm286, %v270, 0
    %290 = vmatprep.subr.mxu0 0.0
    %291 = vmatpush1.msra.mxu0 0.0
    %292 = vmatprep.subr.mxu0 0.0
    %293 = vmatpush1.msra.mxu0 0.0
    %294 = vmatprep.subr.mxu0 0.0
    %295 = vmatpush1.msra.mxu0 0.0
    %296 = vmatprep.subr.mxu0 0.0
    %297 = vmatpush1.msra.mxu0 0.0
    %298 = vmatprep.subr.mxu0 0.0
    %299 = vmatpush1.msra.mxu0 0.0
    %300 = vmatprep.subr.mxu0 0.0
    %301 = vmatpush1.msra.mxu0 0.0
    %302 = vmatprep.subr.mxu0 0.0
    %303 = vmatpush1.msra.mxu0 0.0
    %304 = vmatprep.subr.mxu0 0.0
    %305 = vmatpush1.msra.mxu0 0.0
    %306 = vmatprep.subr.mxu0 0.0
    %307 = vmatpush1.msra.mxu0 %v278
    %308 = vmatprep.subr.mxu0 0.0
    %309 = vmatpush1.msra.mxu0 %v277
    %310 = vmatprep.subr.mxu0 0.0
    %311 = vmatpush1.msra.mxu0 %v276
    %312 = vmatprep.subr.mxu0 0.0
    %313 = vmatpush1.msra.mxu0 %v275
    %314 = vmatprep.subr.mxu0 0.0
    %315 = vmatpush1.msra.mxu0 %v274
    %316 = vmatprep.subr.mxu0 0.0
    %317 = vmatpush1.msra.mxu0 %v273
    %318 = vmatprep.subr.mxu0 0.0
    %319 = vmatpush1.msra.mxu0 %v272
    %320 = vmatprep.subr.mxu0 0.0
    %321 = vmatpush1.msra.mxu0 %v271
    %322 = vmatprep.subr.mxu0 0.0
    %323 = vmatpush2.msra.mxu0 0.0
    %324 = vmatprep.subr.mxu0 0.0
    %325 = vmatpush2.msra.mxu0 0.0
    %326 = vmatprep.subr.mxu0 0.0
    %327 = vmatpush2.msra.mxu0 0.0
    %328 = vmatprep.subr.mxu0 0.0
    %329 = vmatpush2.msra.mxu0 0.0
    %330 = vmatprep.subr.mxu0 0.0
    %331 = vmatpush2.msra.mxu0 0.0
    %332 = vmatprep.subr.mxu0 0.0
    %333 = vmatpush2.msra.mxu0 0.0
    %334 = vmatprep.subr.mxu0 0.0
    %335 = vmatpush2.msra.mxu0 0.0
    %336 = vmatprep.subr.mxu0 0.0
    %337 = vmatpush2.msra.mxu0 0.0
    %338 = vmatprep.subr.mxu0 0.0
    %339 = vmatpush2.msra.mxu0 0.0
    %340 = vmatprep.subr.mxu0 0.0
    %341 = vmatpush2.msra.mxu0 0.0
    %342 = vmatprep.subr.mxu0 0.0
    %343 = vmatpush2.msra.mxu0 0.0
    %344 = vmatprep.subr.mxu0 0.0
    %345 = vmatpush2.msra.mxu0 0.0
    %346 = vmatprep.subr.mxu0 0.0
    %347 = vmatpush2.msra.mxu0 0.0
    %348 = vmatprep.subr.mxu0 0.0
    %349 = vmatpush2.msra.mxu0 0.0
    %350 = vmatprep.subr.mxu0 0.0
    %351 = vmatpush2.msra.mxu0 0.0
    %352 = vmatprep.subr.mxu0 0.0
    %353 = vmatpush2.msra.mxu0 0.0
    %354 = vmatprep.mubr.f32.mxu0 0.0
    %355 = vmatmul.mubr.f32.gmra.mxu0 %v288
    %v356 = vpop.f32.mrf.mxu0
    %v357 = vadd.f32 %v284, %v356
    %v358 = vpop.f32.mrf.mxu0
    %359 = vdwg.mxu0
    %v360 = vmax.f32 %v357, 0.0
    %v361 = vld [vmem:[#allocation9] sm:$0xff]
    %v362 = vld [vmem:[#allocation9 + $0x8] sm:$0xff]
    %v363 = vld [vmem:[#allocation9 + $0x10] sm:$0xff]
    %v364 = vld [vmem:[#allocation9 + $0x18] sm:$0xff]
    %v365 = vld [vmem:[#allocation9 + $0x20] sm:$0xff]
    %v366 = vld [vmem:[#allocation9 + $0x28] sm:$0xff]
    %v367 = vld [vmem:[#allocation9 + $0x30] sm:$0xff]
    %v368 = vld [vmem:[#allocation9 + $0x38] sm:$0xff]
    %v369 = vld [vmem:[%s8] sm:$0x1]
    %v371 = vlaneseq
    %v372 = vshrl.u32 %v371, 7
    %v373 = vsub.s32 0, %v372
    %v374 = vrot.slane %v369, %v373
    %v377 = vsel %vm286, %v360, 0
    %379 = vmatprep.subr.mxu0 0.0
    %380 = vmatpush1.msra.mxu0 0.0
    %381 = vmatprep.subr.mxu0 0.0
    %382 = vmatpush1.msra.mxu0 0.0
    %383 = vmatprep.subr.mxu0 0.0
    %384 = vmatpush1.msra.mxu0 0.0
    %385 = vmatprep.subr.mxu0 0.0
    %386 = vmatpush1.msra.mxu0 0.0
    %387 = vmatprep.subr.mxu0 0.0
    %388 = vmatpush1.msra.mxu0 0.0
    %389 = vmatprep.subr.mxu0 0.0
    %390 = vmatpush1.msra.mxu0 0.0
    %391 = vmatprep.subr.mxu0 0.0
    %392 = vmatpush1.msra.mxu0 0.0
    %393 = vmatprep.subr.mxu0 0.0
    %394 = vmatpush1.msra.mxu0 0.0
    %395 = vmatprep.subr.mxu0 0.0
    %396 = vmatpush1.msra.mxu0 %v368
    %397 = vmatprep.subr.mxu0 0.0
    %398 = vmatpush1.msra.mxu0 %v367
    %399 = vmatprep.subr.mxu0 0.0
    %400 = vmatpush1.msra.mxu0 %v366
    %401 = vmatprep.subr.mxu0 0.0
    %402 = vmatpush1.msra.mxu0 %v365
    %403 = vmatprep.subr.mxu0 0.0
    %404 = vmatpush1.msra.mxu0 %v364
    %405 = vmatprep.subr.mxu0 0.0
    %406 = vmatpush1.msra.mxu0 %v363
    %407 = vmatprep.subr.mxu0 0.0
    %408 = vmatpush1.msra.mxu0 %v362
    %409 = vmatprep.subr.mxu0 0.0
    %410 = vmatpush1.msra.mxu0 %v361
    %411 = vmatprep.subr.mxu0 0.0
    %412 = vmatpush2.msra.mxu0 0.0
    %413 = vmatprep.subr.mxu0 0.0
    %414 = vmatpush2.msra.mxu0 0.0
    %415 = vmatprep.subr.mxu0 0.0
    %416 = vmatpush2.msra.mxu0 0.0
    %417 = vmatprep.subr.mxu0 0.0
    %418 = vmatpush2.msra.mxu0 0.0
    %419 = vmatprep.subr.mxu0 0.0
    %420 = vmatpush2.msra.mxu0 0.0
    %421 = vmatprep.subr.mxu0 0.0
    %422 = vmatpush2.msra.mxu0 0.0
    %423 = vmatprep.subr.mxu0 0.0
    %424 = vmatpush2.msra.mxu0 0.0
    %425 = vmatprep.subr.mxu0 0.0
    %426 = vmatpush2.msra.mxu0 0.0
    %427 = vmatprep.subr.mxu0 0.0
    %428 = vmatpush2.msra.mxu0 0.0
    %429 = vmatprep.subr.mxu0 0.0
    %430 = vmatpush2.msra.mxu0 0.0
    %431 = vmatprep.subr.mxu0 0.0
    %432 = vmatpush2.msra.mxu0 0.0
    %433 = vmatprep.subr.mxu0 0.0
    %434 = vmatpush2.msra.mxu0 0.0
    %435 = vmatprep.subr.mxu0 0.0
    %436 = vmatpush2.msra.mxu0 0.0
    %437 = vmatprep.subr.mxu0 0.0
    %438 = vmatpush2.msra.mxu0 0.0
    %439 = vmatprep.subr.mxu0 0.0
    %440 = vmatpush2.msra.mxu0 0.0
    %441 = vmatprep.subr.mxu0 0.0
    %442 = vmatpush2.msra.mxu0 0.0
    %443 = vmatprep.mubr.f32.mxu0 0.0
    %444 = vmatmul.mubr.f32.gmra.mxu0 %v377
    %v445 = vpop.f32.mrf.mxu0
    %v446 = vadd.f32 %v374, %v445
    %v447 = vpop.f32.mrf.mxu0
    %448 = vdwg.mxu0
    %vm449 = vcmask 15360
    %450 = vst.msk [vmem:[%s9] sm:$0xff] %vm449, %v446
    // Predicated region
    $region58: #{_lambda_.1} parent=1 // pred_check
      _
    $region59: #{_lambda_.1} parent=1 // pred_check_branch
      %452 = sbr.rel (0) target = $region61
    $region60: #{_lambda_.1} parent=1 // pred_region
      _
    $region61: #{_lambda_.1} parent=1 // pred_fallthru
      _
    // Predicated region
    $region62: #{_lambda_.1} parent=1 // pred_check
      _
    $region63: #{_lambda_.1} parent=1 // pred_check_branch
      %454 = sbr.rel (0) target = $region65
    $region64: #{_lambda_.1} parent=1 // pred_region
      _
    $region65: #{_lambda_.1} parent=1 // pred_fallthru
      _
    %455 = vsyncpa [#allocation3], 1
    %456 = vsyncpa [#allocation5], 1
    %457 = vsyncpa [#allocation8], 1

</llo_original>
